<compile_context>
chip_gen: v5e
topology: v5e:2x2
jax: 0.10.0
libtpu: 0.0.40
codegen_flags: <defaults>
</compile_context>

<pallas_src>
import functools

import jax
import jax.numpy as jnp
from jax import lax
from jax.experimental import pallas as pl
from jax.experimental.pallas import tpu as pltpu


VMEM_LIMIT = 64 * 1024 * 1024
TILE_M, TILE_N, TILE_K = 1024, 512, 512


def _pick_tile(dim, target, aligns):
    """Largest tile <= target that divides dim, preferring the first alignment
    in `aligns`; falls back to the full dimension."""
    if dim <= target:
        return dim
    for align in aligns:
        t = (target // align) * align
        while t >= align:
            if dim % t == 0:
                return t
            t -= align
    return dim


# ----------------------------- Pallas kernels -------------------------------

def _dense_kernel(x_ref, w_ref, b_ref, o_ref, acc_ref, *, activation):
    k = pl.program_id(2)

    @pl.when(k == 0)
    def _init():
        acc_ref[...] = jnp.zeros_like(acc_ref)

    acc_ref[...] += jnp.dot(x_ref[...], w_ref[...],
                            preferred_element_type=jnp.float32)

    @pl.when(k == pl.num_programs(2) - 1)
    def _finalize():
        y = acc_ref[...] + b_ref[...]
        if activation == "gelu":
            # TODO(synk): HF BERT uses exact erf GELU; tanh approximation used here.
            y = jax.nn.gelu(y, approximate=True)
        elif activation == "tanh":
            y = jnp.tanh(y)
        o_ref[...] = y.astype(o_ref.dtype)


def dense(x, w, b, activation="none", out_dtype=jnp.bfloat16):
    """x: (M, K) bf16, w: (K, N) bf16, b: (N,) f32 -> (M, N). Tiled + pipelined."""
    M, K = x.shape
    N = w.shape[1]
    tm = _pick_tile(M, TILE_M, (16, 8))
    tn = _pick_tile(N, TILE_N, (256, 128))
    tk = _pick_tile(K, TILE_K, (256, 128))
    return pl.pallas_call(
        functools.partial(_dense_kernel, activation=activation),
        out_shape=jax.ShapeDtypeStruct((M, N), out_dtype),
        grid=(M // tm, N // tn, K // tk),
        in_specs=[
            pl.BlockSpec((tm, tk), lambda i, j, k: (i, k)),
            pl.BlockSpec((tk, tn), lambda i, j, k: (k, j)),
            pl.BlockSpec((1, tn), lambda i, j, k: (0, j)),
        ],
        out_specs=pl.BlockSpec((tm, tn), lambda i, j, k: (i, j)),
        scratch_shapes=[pltpu.VMEM((tm, tn), jnp.float32)],
        compiler_params=pltpu.CompilerParams(
            dimension_semantics=("parallel", "parallel", "arbitrary"),
            vmem_limit_bytes=VMEM_LIMIT),
    )(x, w, b.reshape(1, N))


def _dense_small_kernel(x_ref, w_ref, b_ref, o_ref, *, activation):
    y = jnp.dot(x_ref[...], w_ref[...],
                preferred_element_type=jnp.float32) + b_ref[...]
    if activation == "tanh":
        y = jnp.tanh(y)
    o_ref[...] = y.astype(o_ref.dtype)


def dense_small(x, w, b, activation="none", out_dtype=jnp.bfloat16):
    """Single-block matmul for tiny-M ops (pooler, class head): no grid, no
    accumulator scratch, no pipelining overhead."""
    M, K = x.shape
    N = w.shape[1]
    return pl.pallas_call(
        functools.partial(_dense_small_kernel, activation=activation),
        out_shape=jax.ShapeDtypeStruct((M, N), out_dtype),
        compiler_params=pltpu.CompilerParams(vmem_limit_bytes=VMEM_LIMIT),
    )(x, w, b.reshape(1, N))


def _dense_res_ln_kernel(x_ref, w_ref, b_ref, res_ref, g_ref, beta_ref,
                         o_ref, acc_ref, *, eps):
    k = pl.program_id(1)

    @pl.when(k == 0)
    def _init():
        acc_ref[...] = jnp.zeros_like(acc_ref)

    acc_ref[...] += jnp.dot(x_ref[...], w_ref[...],
                            preferred_element_type=jnp.float32)

    @pl.when(k == pl.num_programs(1) - 1)
    def _finalize():
        # bias + residual add + layernorm fused into the matmul epilogue (f32 stats)
        y = acc_ref[...] + b_ref[...] + res_ref[...].astype(jnp.float32)
        mu = jnp.mean(y, axis=-1, keepdims=True)
        var = jnp.mean(jnp.square(y - mu), axis=-1, keepdims=True)
        yn = (y - mu) * lax.rsqrt(var + eps)
        o_ref[...] = (yn * g_ref[...] + beta_ref[...]).astype(o_ref.dtype)


def dense_residual_layernorm(x, w, b, residual, gamma, beta,
                             eps=1e-12, out_dtype=jnp.bfloat16):
    """LayerNorm(x @ w + b + residual). Output tile spans the full hidden row."""
    M, K = x.shape
    N = w.shape[1]
    tm = _pick_tile(M, TILE_M, (16, 8))
    tk = _pick_tile(K, TILE_K, (256, 128))
    return pl.pallas_call(
        functools.partial(_dense_res_ln_kernel, eps=eps),
        out_shape=jax.ShapeDtypeStruct((M, N), out_dtype),
        grid=(M // tm, K // tk),
        in_specs=[
            pl.BlockSpec((tm, tk), lambda i, k: (i, k)),
            pl.BlockSpec((tk, N), lambda i, k: (k, 0)),
            pl.BlockSpec((1, N), lambda i, k: (0, 0)),
            pl.BlockSpec((tm, N), lambda i, k: (i, 0)),
            pl.BlockSpec((1, N), lambda i, k: (0, 0)),
            pl.BlockSpec((1, N), lambda i, k: (0, 0)),
        ],
        out_specs=pl.BlockSpec((tm, N), lambda i, k: (i, 0)),
        scratch_shapes=[pltpu.VMEM((tm, N), jnp.float32)],
        compiler_params=pltpu.CompilerParams(
            dimension_semantics=("parallel", "arbitrary"),
            vmem_limit_bytes=VMEM_LIMIT),
    )(x, w, b.reshape(1, N), residual, gamma.reshape(1, N), beta.reshape(1, N))


def _layernorm_kernel(x_ref, g_ref, b_ref, o_ref, *, eps):
    x = x_ref[...].astype(jnp.float32)
    mu = jnp.mean(x, axis=-1, keepdims=True)
    var = jnp.mean(jnp.square(x - mu), axis=-1, keepdims=True)
    y = (x - mu) * lax.rsqrt(var + eps)
    o_ref[...] = (y * g_ref[...] + b_ref[...]).astype(o_ref.dtype)


def layernorm(x, gamma, beta, eps=1e-12, out_dtype=jnp.bfloat16):
    """x: (M, H) bf16, gamma/beta: (H,) f32. Stats in f32, tiled over rows."""
    M, H = x.shape
    tm = _pick_tile(M, 1024, (16, 8))
    return pl.pallas_call(
        functools.partial(_layernorm_kernel, eps=eps),
        out_shape=jax.ShapeDtypeStruct((M, H), out_dtype),
        grid=(M // tm,),
        in_specs=[pl.BlockSpec((tm, H), lambda i: (i, 0)),
                  pl.BlockSpec((1, H), lambda i: (0, 0)),
                  pl.BlockSpec((1, H), lambda i: (0, 0))],
        out_specs=pl.BlockSpec((tm, H), lambda i: (i, 0)),
        compiler_params=pltpu.CompilerParams(
            dimension_semantics=("parallel",),
            vmem_limit_bytes=VMEM_LIMIT),
    )(x, gamma.reshape(1, H), beta.reshape(1, H))


def _attention_kernel(q_ref, k_ref, v_ref, m_ref, o_ref, *,
                      heads_per_block, head_dim, scale):
    # One (batch, head-block) per grid step. Block lane width = heads_per_block *
    # head_dim (128 for BERT-base head_dim=64). Only a tiny loop over the heads
    # inside the block (typically 2); scores/softmax in f32, p@v in bf16 on MXU.
    m = m_ref[0]                      # (1, S) additive mask, broadcasts over rows
    q = q_ref[0]                      # (S, blk) bf16
    k = k_ref[0]
    v = v_ref[0]
    ctx = []
    for h in range(heads_per_block):
        sl = slice(h * head_dim, (h + 1) * head_dim)
        qh, kh, vh = q[:, sl], k[:, sl], v[:, sl]
        # contract on head_dim without an explicit transpose
        s = lax.dot_general(qh, kh, (((1,), (1,)), ((), ())),
                            preferred_element_type=jnp.float32) * scale
        s = s + m
        s = s - jnp.max(s, axis=-1, keepdims=True)
        p = jnp.exp(s)
        inv = pl.reciprocal(jnp.sum(p, axis=-1, keepdims=True), approx=True)
        p = (p * inv).astype(v_ref.dtype)
        ctx.append(jnp.dot(p, vh, preferred_element_type=jnp.float32))
    out = ctx[0] if heads_per_block == 1 else jnp.concatenate(ctx, axis=-1)
    o_ref[0] = out.astype(o_ref.dtype)


def attention(qkv, add_mask, n_heads, head_dim, out_dtype=jnp.bfloat16):
    """qkv: (B, S, 3H) bf16 (fused Q|K|V, heads folded in H); add_mask: (B,1,S).

    BlockSpecs slice Q/K/V and the head blocks out of the fused tensor directly
    (no jnp.split / extra HBM round trips); grid=(B, n_head_blocks), both
    axes parallel. Requires heads_per_block*head_dim to be a multiple of 128
    (true for BERT-base 64-dim heads) or equal to 3H.
    """
    # TODO(synk): switch to an online-softmax / flash formulation (KV grid axis +
    # f32 m/l/acc scratch) for S >= 512 so the (S, S) scores never materialize.
    B, S, threeH = qkv.shape
    H = threeH // 3
    hpb = min(n_heads, max(1, 128 // head_dim))
    while n_heads % hpb:
        hpb -= 1
    blk = hpb * head_dim              # lane width of one q/k/v/out block
    nhb = n_heads // hpb              # number of head blocks (grid axis 1)
    scale = 1.0 / float(head_dim) ** 0.5

    def spec(off):                    # off = block offset of q/k/v inside 3H
        return pl.BlockSpec((1, S, blk), lambda b, hp, off=off: (b, 0, off + hp))

    return pl.pallas_call(
        functools.partial(_attention_kernel, heads_per_block=hpb,
                          head_dim=head_dim, scale=scale),
        out_shape=jax.ShapeDtypeStruct((B, S, H), out_dtype),
        grid=(B, nhb),
        in_specs=[spec(0), spec(nhb), spec(2 * nhb),
                  pl.BlockSpec((1, 1, S), lambda b, hp: (b, 0, 0))],
        out_specs=pl.BlockSpec((1, S, blk), lambda b, hp: (b, 0, hp)),
        compiler_params=pltpu.CompilerParams(
            dimension_semantics=("parallel", "parallel"),
            vmem_limit_bytes=VMEM_LIMIT),
    )(qkv, qkv, qkv, add_mask)


# ----------------------------- parameter setup -------------------------------

HEAD_PAD = 128  # pad classifier output dims to a full lane width (dense stores)


def _pad_head(w, b, n_pad):
    K, N = w.shape
    w_pad = jnp.zeros((K, n_pad), w.dtype).at[:, :N].set(w)
    b_pad = jnp.zeros((n_pad,), b.dtype).at[:N].set(b)
    return w_pad, b_pad


def init_params(key, cfg):
    H, I = cfg["hidden"], cfg["intermediate"]

    def norm(k, shape):
        # bf16 weights (MXU-native); biases / LN params stay f32.
        return (0.02 * jax.random.normal(k, shape, dtype=jnp.float32)).astype(jnp.bfloat16)

    keys = iter(jax.random.split(key, 128))
    class_w = norm(next(keys), (H, cfg["n_class"]))
    class_b = jnp.zeros((cfg["n_class"],), jnp.float32)
    trig_w = norm(next(keys), (H, cfg["n_trigger"]))
    trig_b = jnp.zeros((cfg["n_trigger"],), jnp.float32)
    class_w_pad, class_b_pad = _pad_head(class_w, class_b, HEAD_PAD)
    trig_w_pad, trig_b_pad = _pad_head(trig_w, trig_b, HEAD_PAD)

    params = {
        "word_emb": 0.02 * jax.random.normal(next(keys), (cfg["vocab"], H), jnp.float32),
        "pos_emb": 0.02 * jax.random.normal(next(keys), (cfg["max_pos"], H), jnp.float32),
        "type_emb": 0.02 * jax.random.normal(next(keys), (cfg["type_vocab"], H), jnp.float32),
        "emb_ln_g": jnp.ones((H,), jnp.float32),
        "emb_ln_b": jnp.zeros((H,), jnp.float32),
        "layers": [],
        "pool_w": norm(next(keys), (H, H)),
        "pool_b": jnp.zeros((H,), jnp.float32),
        # self.class_classifier = nn.Linear(768, 36) (hidden scaled to H), lane-padded
        "class_w_pad": class_w_pad, "class_b_pad": class_b_pad,
        # self.trigger_classifier = nn.Linear(768, 2), lane-padded
        "trig_w_pad": trig_w_pad, "trig_b_pad": trig_b_pad,
    }
    for _ in range(cfg["layers"]):
        wq, wk, wv = (norm(next(keys), (H, H)) for _ in range(3))
        layer = {
            # fused Q|K|V projection: one (H, 3H) matmul per layer
            "wqkv": jnp.concatenate([wq, wk, wv], axis=1),
            "bqkv": jnp.zeros((3 * H,), jnp.float32),
            "wo": norm(next(keys), (H, H)), "bo": jnp.zeros((H,), jnp.float32),
            "ln1_g": jnp.ones((H,), jnp.float32), "ln1_b": jnp.zeros((H,), jnp.float32),
            "w1": norm(next(keys), (H, I)), "b1": jnp.zeros((I,), jnp.float32),
            "w2": norm(next(keys), (I, H)), "b2": jnp.zeros((H,), jnp.float32),
            "ln2_g": jnp.ones((H,), jnp.float32), "ln2_b": jnp.zeros((H,), jnp.float32),
        }
        params["layers"].append(layer)
    return params


# ----------------------------- forward pass ----------------------------------

def multi_task_bert_forward(params, cfg, input_ids, attention_mask, token_type_ids):
    B, S = input_ids.shape
    H, nH = cfg["hidden"], cfg["heads"]
    head_dim = H // nH

    # --- BERT embeddings (gather = glue; LN kernel reads bf16 -> half the HBM) ---
    pos_ids = jnp.arange(S)
    emb = (jnp.take(params["word_emb"], input_ids, axis=0)
           + jnp.take(params["pos_emb"], pos_ids, axis=0)[None, :, :]
           + jnp.take(params["type_emb"], token_type_ids, axis=0)).astype(jnp.bfloat16)
    x = layernorm(emb.reshape(B * S, H), params["emb_ln_g"], params["emb_ln_b"])
    # embedding / class / trigger dropout are identity in eval mode

    add_mask = ((1.0 - attention_mask.astype(jnp.float32)) * (-1e9)).reshape(B, 1, S)

    # --- BERT encoder layers ---
    for layer in params["layers"]:
        qkv = dense(x, layer["wqkv"], layer["bqkv"])               # (B*S, 3H) bf16
        # no jnp.split: attention slices Q/K/V + head blocks via BlockSpecs
        ctx = attention(qkv.reshape(B, S, 3 * H), add_mask, nH, head_dim)  # (B,S,H)
        # attn output projection + residual + layernorm fused
        x = dense_residual_layernorm(ctx.reshape(B * S, H), layer["wo"], layer["bo"],
                                     x, layer["ln1_g"], layer["ln1_b"])
        ffn = dense(x, layer["w1"], layer["b1"], activation="gelu")  # (B*S, I) bf16
        # FFN down projection + residual + layernorm fused
        x = dense_residual_layernorm(ffn, layer["w2"], layer["b2"],
                                     x, layer["ln2_g"], layer["ln2_b"])

    last_hidden = x.reshape(B, S, H)                               # (B, S, H) bf16

    # --- BERT pooler: tanh(W @ hidden[:,0] + b) (tiny M -> single-block kernel) ---
    pooled = dense_small(last_hidden[:, 0, :], params["pool_w"], params["pool_b"],
                         activation="tanh")

    # --- heads (lane-padded weights, slice back to true widths) ---
    class_logits = dense_small(pooled, params["class_w_pad"], params["class_b_pad"],
                               out_dtype=jnp.float32)[:, :cfg["n_class"]]    # (B, 36)
    trig = dense(x, params["trig_w_pad"], params["trig_b_pad"],
                 out_dtype=jnp.float32)[:, :cfg["n_trigger"]]                # (B*S, 2)
    trigger_logits = trig.reshape(B, S, cfg["n_trigger"])                    # (B, S, 2)
    return class_logits, trigger_logits


# ----------------------------- main -------------------------------------------

if __name__ == "__main__":
    # Small but lane-aligned config: hidden=128 (= one 128-lane block), 2 heads of
    # 64 dims so the head-pair attention BlockSpecs exercise the real code path.
    cfg = dict(vocab=50, type_vocab=2, max_pos=16, hidden=128, heads=2,
               layers=2, intermediate=256, n_class=36, n_trigger=2)

    root = jax.random.PRNGKey(0)
    param_key, ids_key = jax.random.split(root)
    params = init_params(param_key, cfg)

    B, S = 2, 8
    input_ids = jax.random.randint(ids_key, (B, S), 0, cfg["vocab"], dtype=jnp.int32)
    attention_mask = jnp.ones((B, S), dtype=jnp.int32).at[1, 6:].set(0)
    token_type_ids = jnp.zeros((B, S), dtype=jnp.int32).at[:, 4:].set(1)

    class_logits, trigger_logits = multi_task_bert_forward(
        params, cfg, input_ids, attention_mask, token_type_ids)
    jax.block_until_ready((class_logits, trigger_logits))

    assert class_logits.shape == (B, cfg["n_class"])
    assert trigger_logits.shape == (B, S, cfg["n_trigger"])
    print("KERNEL_OK")
</pallas_src>

<mosaic_0001>
module attributes {stable_mosaic.version = 11 : i64} {
  func.func @_layernorm_kernel(%arg0: i32, %arg1: memref<16x128xbf16, #tpu.memory_space<vmem>>, %arg2: memref<1x128xf32, #tpu.memory_space<vmem>>, %arg3: memref<1x128xf32, #tpu.memory_space<vmem>>, %arg4: memref<16x128xbf16, #tpu.memory_space<vmem>>) attributes {dimension_semantics = [#tpu.dimension_semantics<parallel>], iteration_bounds = array<i64: 1>, scalar_prefetch = 0 : i64, scratch_operands = 0 : i64, tpu.core_type = #tpu.core_type<tc>, window_params = [{transform_indices = @transform_0, window_bounds = array<i64: 16, 128>}, {pipeline_mode = #tpu.pipeline_mode<synchronous>, transform_indices = @transform_1, window_bounds = array<i64: 1, 128>}, {pipeline_mode = #tpu.pipeline_mode<synchronous>, transform_indices = @transform_2, window_bounds = array<i64: 1, 128>}, {transform_indices = @transform_3, window_bounds = array<i64: 16, 128>}]} {
    %c0 = arith.constant 0 : index
    %c0_0 = arith.constant 0 : index
    %0 = vector.load %arg1[%c0, %c0_0] : memref<16x128xbf16, #tpu.memory_space<vmem>>, vector<16x128xbf16>
    %1 = arith.extf %0 : vector<16x128xbf16> to vector<16x128xf32>
    %cst = arith.constant dense<0.000000e+00> : vector<16xf32>
    %2 = vector.multi_reduction <add>, %1, %cst [1] : vector<16x128xf32> to vector<16xf32>
    %3 = vector.shape_cast %2 : vector<16xf32> to vector<16x1xf32>
    %cst_1 = arith.constant 1.280000e+02 : f32
    %4 = vector.broadcast %cst_1 : f32 to vector<16x1xf32>
    %5 = arith.divf %3, %4 : vector<16x1xf32>
    %6 = vector.broadcast %5 : vector<16x1xf32> to vector<16x128xf32>
    %7 = arith.subf %1, %6 : vector<16x128xf32>
    %8 = arith.mulf %7, %7 : vector<16x128xf32>
    %cst_2 = arith.constant dense<0.000000e+00> : vector<16xf32>
    %9 = vector.multi_reduction <add>, %8, %cst_2 [1] : vector<16x128xf32> to vector<16xf32>
    %10 = vector.shape_cast %9 : vector<16xf32> to vector<16x1xf32>
    %cst_3 = arith.constant 1.280000e+02 : f32
    %11 = vector.broadcast %cst_3 : f32 to vector<16x1xf32>
    %12 = arith.divf %10, %11 : vector<16x1xf32>
    %13 = vector.broadcast %5 : vector<16x1xf32> to vector<16x128xf32>
    %14 = arith.subf %1, %13 : vector<16x128xf32>
    %cst_4 = arith.constant 9.99999996E-13 : f32
    %15 = vector.broadcast %cst_4 : f32 to vector<16x1xf32>
    %16 = arith.addf %12, %15 : vector<16x1xf32>
    %17 = math.rsqrt %16 : vector<16x1xf32>
    %18 = vector.broadcast %17 : vector<16x1xf32> to vector<16x128xf32>
    %19 = arith.mulf %14, %18 : vector<16x128xf32>
    %c0_5 = arith.constant 0 : index
    %c0_6 = arith.constant 0 : index
    %20 = vector.load %arg2[%c0_5, %c0_6] : memref<1x128xf32, #tpu.memory_space<vmem>>, vector<1x128xf32>
    %21 = vector.broadcast %20 : vector<1x128xf32> to vector<16x128xf32>
    %22 = arith.mulf %19, %21 : vector<16x128xf32>
    %c0_7 = arith.constant 0 : index
    %c0_8 = arith.constant 0 : index
    %23 = vector.load %arg3[%c0_7, %c0_8] : memref<1x128xf32, #tpu.memory_space<vmem>>, vector<1x128xf32>
    %24 = vector.broadcast %23 : vector<1x128xf32> to vector<16x128xf32>
    %25 = arith.addf %22, %24 : vector<16x128xf32>
    %26 = arith.truncf %25 : vector<16x128xf32> to vector<16x128xbf16>
    %c0_9 = arith.constant 0 : index
    %c0_10 = arith.constant 0 : index
    %27 = vector.load %arg4[%c0_9, %c0_10] : memref<16x128xbf16, #tpu.memory_space<vmem>>, vector<16x128xbf16>
    tpu.vector_store %arg4[%c0_9, %c0_10], %26 {strides = array<i32>} : memref<16x128xbf16, #tpu.memory_space<vmem>>, vector<16x128xbf16>,
    return
  }
  func.func @transform_0(%arg0: i32) -> (i32, i32) {
    %c0_i32 = arith.constant 0 : i32
    %c0_i32_0 = arith.constant 0 : i32
    return %arg0, %c0_i32 : i32, i32
  }
  func.func @transform_1(%arg0: i32) -> (i32, i32) {
    %c0_i32 = arith.constant 0 : i32
    %c0_i32_0 = arith.constant 0 : i32
    %c0_i32_1 = arith.constant 0 : i32
    return %c0_i32, %c0_i32_0 : i32, i32
  }
  func.func @transform_2(%arg0: i32) -> (i32, i32) {
    %c0_i32 = arith.constant 0 : i32
    %c0_i32_0 = arith.constant 0 : i32
    %c0_i32_1 = arith.constant 0 : i32
    return %c0_i32, %c0_i32_0 : i32, i32
  }
  func.func @transform_3(%arg0: i32) -> (i32, i32) {
    %c0_i32 = arith.constant 0 : i32
    %c0_i32_0 = arith.constant 0 : i32
    return %arg0, %c0_i32 : i32, i32
  }
}

</mosaic_0001>

<llo_original>
// kernel: tpu_custom_call.1
$region0: #{tpu_custom_call.1}
  #allocation0 [shape = 'u32[]', space=smem, size = 0x4, offset = 0x4, fixed_abs, tag = 'smem constant byte address 0x4 - core index']
  #allocation1 [shape = 'u32[72,128]{1,0:T(1,128)}', space=vmem, size = 0x9000, scoped, tag = 'internal scratch']
  %s0 = inlined_call_operand.hbm [shape: bf16[16,128], index: 0, kind: input, shape index: {}]
  %s1 = inlined_call_operand.hbm [shape: f32[1,128], index: 1, kind: input, shape index: {}]
  %s2 = inlined_call_operand.vmem [shape: f32[1,128], index: 2, kind: input, shape index: {}]
  %s3 = inlined_call_operand.hbm [shape: bf16[16,128], index: 3, kind: output, shape index: {}]
  %s4 = sld [smem:[#allocation0]]
  $region30: #{tpu_custom_call.1} parent=0
    _
  %s6 = ssub.s32 1, %s4
  %s7 = scalar_select 0, %s6, %s4
  $region1: #{tpu_custom_call.1} parent=0
    #allocation2 [shape = 'u8[4096]{0}', space=vmem, size = 0x1000, scoped, tag = 'input window, operand 0, single buffered']
    #allocation3 [shape = 's32[1]{0}', space=sflag, size = 0x4, scoped, tag = 'scoped memory for tpu_custom_call.1']
    #allocation4 [shape = 's32[1]{0}', space=sflag, size = 0x4, scoped, tag = 'scoped memory for tpu_custom_call.1']
    #allocation5 [shape = 'u8[512]{0}', space=vmem, size = 0x400, scoped, tag = 'input window, operand 1, single buffered']
    #allocation6 [shape = 's32[1]{0}', space=sflag, size = 0x4, scoped, tag = 'scoped memory for tpu_custom_call.1']
    #allocation7 [shape = 'u8[4096]{0}', space=vmem, size = 0x1000, scoped, tag = 'output window, operand 0, single buffered']
    %8 = vsyncpa [#allocation3], 0
    %9 = vsyncpa [#allocation6], 0
    %10 = vsyncpa [#allocation4], 0
    // Predicated region
    $region2: #{tpu_custom_call.1} parent=1 // pred_check
      _
    $region3: #{tpu_custom_call.1} parent=1 // pred_check_branch
      %12 = sbr.rel (0) target = $region5
    $region4: #{tpu_custom_call.1} parent=1 // pred_region
      %14 = vsyncadd [#allocation3], 0
      %s15 = sshll.u32 %s0, 4
      %s16 = int_to_ptr.hbm [resolvable:$true] %s15
      %s17 = sshll.u32 [#allocation2], 4
      %s18 = int_to_ptr.vmem [resolvable:$true] %s17
      %23 = dma.hbm_to_vmem [thread:$0]  %s16, 128, %s18, [#allocation3], 64, 64, 4
    $region5: #{tpu_custom_call.1} parent=1 // pred_fallthru
      _
    // Predicated region
    $region6: #{tpu_custom_call.1} parent=1 // pred_check
      _
    $region7: #{tpu_custom_call.1} parent=1 // pred_check_branch
      %25 = sbr.rel (0) target = $region9
    $region8: #{tpu_custom_call.1} parent=1 // pred_region
      %27 = vsyncadd [#allocation6], 0
      %s29 = sshll.u32 %s1, 4
      %s30 = int_to_ptr.hbm [resolvable:$true] %s29
      %s31 = sshll.u32 [#allocation5], 4
      %s32 = int_to_ptr.vmem [resolvable:$true] %s31
      %34 = dma.hbm_to_vmem [thread:$0]  %s30, 16, %s32, [#allocation6]
    $region9: #{tpu_custom_call.1} parent=1 // pred_fallthru
      _
    // Predicated region
    $region10: #{tpu_custom_call.1} parent=1 // pred_check
      _
    $region11: #{tpu_custom_call.1} parent=1 // pred_check_branch
      %36 = sbr.rel (0) target = $region13
    $region12: #{tpu_custom_call.1} parent=1 // pred_region
      _
    $region13: #{tpu_custom_call.1} parent=1 // pred_fallthru
      _
    // Predicated region
    $region14: #{tpu_custom_call.1} parent=1 // pred_check
      _
    $region15: #{tpu_custom_call.1} parent=1 // pred_check_branch
      %38 = sbr.rel (0) target = $region17
    $region16: #{tpu_custom_call.1} parent=1 // pred_region
      %40 = dma.done [#allocation3], 128
    $region17: #{tpu_custom_call.1} parent=1 // pred_fallthru
      _
    // Predicated region
    $region18: #{tpu_custom_call.1} parent=1 // pred_check
      _
    $region19: #{tpu_custom_call.1} parent=1 // pred_check_branch
      %42 = sbr.rel (0) target = $region21
    $region20: #{tpu_custom_call.1} parent=1 // pred_region
      %44 = dma.done [#allocation6], 16
    $region21: #{tpu_custom_call.1} parent=1 // pred_fallthru
      _
    %v45 = vld [vmem:[#allocation2] sm:$0xf]
    %v46 = vld [vmem:[#allocation2 + $0x4] sm:$0xf]
    %v47 = vunpack.c.l.bf16 %v45
    %v48 = vunpack.c.l.bf16 %v46
    %49 = vadd.xlane.f32.xlu0 %v47
    %v50 = vpop.xlane.xlu0 %49
    %51 = vadd.xlane.f32.xlu0 %v48
    %v52 = vpop.xlane.xlu0 %51
    %v53 = vrcp.pop 128.0
    %v54 = vmul.f32 128.0, %v53
    %v55 = vsub.f32 1.0, %v54
    %v56 = vmul.f32 %v53, %v55
    %v57 = vadd.f32 %v53, %v56
    %vm58 = vweird.f32 %v53
    %v59 = vsel %vm58, %v53, %v57
    %v60 = vmul.f32 %v50, %v59
    %v61 = vmul.f32 %v52, %v59
    %v62 = vsub.f32 %v47, %v60
    %v63 = vsub.f32 %v48, %v61
    %v64 = vmul.f32 %v62, %v62
    %v65 = vmul.f32 %v63, %v63
    %66 = vadd.xlane.f32.xlu0 %v64
    %v67 = vpop.xlane.xlu0 %66
    %68 = vadd.xlane.f32.xlu0 %v65
    %v69 = vpop.xlane.xlu0 %68
    %v70 = vmul.f32 %v67, %v59
    %v71 = vmul.f32 %v69, %v59
    %v72 = vadd.f32 %v70, 1e-12
    %v73 = vadd.f32 %v71, 1e-12
    %v74 = vrsqrt.pop %v72
    %v75 = vmul.f32 %v74, %v72
    %v76 = vmul.f32 %v75, %v74
    %v77 = vmul.f32 0.5, %v76
    %v78 = vsub.f32 1.5, %v77
    %v79 = vmul.f32 %v74, %v78
    %vm80 = vweird.f32 %v72
    %vm81 = vweird.f32 %v74
    %vm82 = vmor %vm80, %vm81
    %v83 = vsel %vm82, %v74, %v79
    %v84 = vrsqrt.pop %v73
    %v85 = vmul.f32 %v84, %v73
    %v86 = vmul.f32 %v85, %v84
    %v87 = vmul.f32 0.5, %v86
    %v88 = vsub.f32 1.5, %v87
    %v89 = vmul.f32 %v84, %v88
    %vm90 = vweird.f32 %v73
    %vm91 = vweird.f32 %v84
    %vm92 = vmor %vm90, %vm91
    %v93 = vsel %vm92, %v84, %v89
    %v94 = vmul.f32 %v62, %v83
    %v95 = vmul.f32 %v63, %v93
    %v96 = vld [vmem:[#allocation5] sm:$0x1]
    %v98 = vperm.slane %v96, 0
    %v100 = vmul.f32 %v94, %v98
    %v101 = vmul.f32 %v95, %v98
    %v102 = vld [vmem:[%s2] sm:$0x1]
    %v104 = vperm.slane %v102, 0
    %v106 = vadd.f32 %v100, %v104
    %v107 = vadd.f32 %v101, %v104
    %v108 = vpack.c.bf16 %v106, %v106
    %v109 = vpack.c.bf16 %v107, %v107
    %110 = vst [vmem:[#allocation7] sm:$0xf] %v108
    %111 = vst [vmem:[#allocation7 + $0x4] sm:$0xf] %v109
    // Predicated region
    $region22: #{tpu_custom_call.1} parent=1 // pred_check
      _
    $region23: #{tpu_custom_call.1} parent=1 // pred_check_branch
      %113 = sbr.rel (0) target = $region25
    $region24: #{tpu_custom_call.1} parent=1 // pred_region
      %115 = vsyncadd [#allocation4], 0
      %s116 = sshll.u32 [#allocation7], 4
      %s117 = int_to_ptr.vmem [resolvable:$true] %s116
      %s118 = sshll.u32 %s3, 4
      %s119 = int_to_ptr.hbm [resolvable:$true] %s118
      %124 = dma.vmem_to_hbm [thread:$0]  %s117, 128, %s119, [#allocation4], 64, 64, 4
    $region25: #{tpu_custom_call.1} parent=1 // pred_fallthru
      _
    // Predicated region
    $region26: #{tpu_custom_call.1} parent=1 // pred_check
      _
    $region27: #{tpu_custom_call.1} parent=1 // pred_check_branch
      %126 = sbr.rel (0) target = $region29
    $region28: #{tpu_custom_call.1} parent=1 // pred_region
      %128 = dma.done [#allocation4], 128
    $region29: #{tpu_custom_call.1} parent=1 // pred_fallthru
      _
    %129 = vsyncpa [#allocation3], 1
    %130 = vsyncpa [#allocation6], 1
    %131 = vsyncpa [#allocation4], 1

</llo_original>
